<compile_context>
chip_gen: v7x
topology: tpu7x:2x2x1
jax: 0.10.0
libtpu: 0.0.40
codegen_flags: <defaults>
</compile_context>

<pallas_src>
import jax
import jax.numpy as jnp
from jax.experimental import pallas as pl
from jax.experimental.pallas import tpu as pltpu

LANE = 128
NEG_INF = -1e30  # finite stand-in for -inf on padded class lanes


def _round_up(x, m):
    return (x + m - 1) // m * m


def mlp_kernel(x_ref, w1_ref, b1_ref, w2_ref, b2_ref, o_ref):
    # x_ref: [TB, D_in] f32 (cast to bf16 here -> no separate XLA pad/cast pass),
    # w1: [D_in, Hp] bf16, b1: [1, Hp] f32,
    # w2: [Hp, Cp] bf16, b2: [1, Cp] f32 (NEG_INF on padded class lanes),
    # o_ref: [TB, Cp] bf16.
    x = x_ref[...].astype(jnp.bfloat16)
    h = jnp.dot(x, w1_ref[...], preferred_element_type=jnp.float32)
    h = jnp.maximum(h + b1_ref[...], 0.0)                       # ReLU (f32)
    logits = jnp.dot(h.astype(jnp.bfloat16), w2_ref[...],
                     preferred_element_type=jnp.float32)
    logits = logits + b2_ref[...]                               # padded lanes -> -1e30
    m = jnp.max(logits, axis=-1, keepdims=True)
    e = jnp.exp(logits - m)
    denom = jnp.sum(e, axis=-1, keepdims=True)
    # Exact normalization (VPU divide is free under the HBM bound) so rows sum
    # to 1 to f32 accuracy before the bf16 output cast.
    o_ref[...] = (e / denom).astype(o_ref.dtype)


def mlp_forward(x, w1p, b1p, w2p, b2p, *, num_classes, block_b=1024, unpad=True):
    """x: [B, D_in] f32 (unpadded). w*/b*: lane-padded params from pad_mlp_params.

    Returns softmax probabilities in bf16: [B, num_classes] if unpad=True
    (module semantics), else the padded [B_pad, Cp] slab (skips the extra
    slice pass for downstream code that tolerates the padded layout).
    """
    B, D_in = x.shape
    assert w1p.shape[0] == D_in
    Hp = w1p.shape[1]
    Cp = w2p.shape[1]

    # Balanced batch tiles: never a mostly-padding last tile; even tile count
    # when >1 so v7x's two TensorCores split the grid evenly.
    n_tiles = max(1, -(-B // block_b))
    if n_tiles > 1 and n_tiles % 2:
        n_tiles += 1
    TB = _round_up(-(-B // n_tiles), 8)
    B_pad = _round_up(B, TB)

    # Only pad the batch dim, and only when necessary (no pad/cast pass over D).
    xin = x if B_pad == B else jnp.pad(x, ((0, B_pad - B), (0, 0)))

    out = pl.pallas_call(
        mlp_kernel,
        out_shape=jax.ShapeDtypeStruct((B_pad, Cp), jnp.bfloat16),
        grid=(B_pad // TB,),
        in_specs=[
            pl.BlockSpec((TB, D_in), lambda i: (i, 0)),   # x: batch-tiled, f32
            pl.BlockSpec((D_in, Hp), lambda i: (0, 0)),   # W1: resident in VMEM
            pl.BlockSpec((1, Hp), lambda i: (0, 0)),      # b1: resident
            pl.BlockSpec((Hp, Cp), lambda i: (0, 0)),     # W2: resident
            pl.BlockSpec((1, Cp), lambda i: (0, 0)),      # b2: resident
        ],
        out_specs=pl.BlockSpec((TB, Cp), lambda i: (i, 0)),
        compiler_params=pltpu.CompilerParams(
            # Batch tiles are independent -> megacore sharding on v7x.
            dimension_semantics=("parallel",),
            # VMEM per step at TB=1024: 2x(1024x64 bf16) + 2x(1024x128 bf16)
            # + ~50 KiB resident weights  -> well under every generation's
            # scoped default, so no vmem_limit_bytes override needed.
        ),
    )(xin, w1p, b1p, w2p, b2p)

    if unpad:
        return out[:B, :num_classes]
    return out


def init_linear_params(key, in_features, out_features):
    # Mirrors nn.Linear default init: U(-1/sqrt(in), 1/sqrt(in)) for W and b.
    # W is stored transposed vs. PyTorch ([in, out]) so the kernel does x @ W.
    kw, kb = jax.random.split(key)
    bound = 1.0 / jnp.sqrt(jnp.float32(in_features))
    w = jax.random.uniform(kw, (in_features, out_features), jnp.float32,
                           minval=-bound, maxval=bound)
    b = jax.random.uniform(kb, (1, out_features), jnp.float32,
                           minval=-bound, maxval=bound)
    return w, b


def pad_mlp_params(w1, b1, w2, b2):
    """Pad hidden/class dims to lane-dense (multiple-of-128) sizes; bf16 weights.

    D_in is NOT padded (it rides through as a full-dim block). Padding is
    numerically exact:
      * extra hidden units have zero W1-cols / b1 / W2-rows, so ReLU(0)=0
        contributes nothing,
      * extra classes get b2 = -1e30 so exp underflows to exactly 0 and they
        don't perturb the softmax normalization.
    """
    D_in, H = w1.shape
    C = w2.shape[1]
    Hp, Cp = _round_up(H, LANE), _round_up(C, LANE)

    w1p = jnp.zeros((D_in, Hp), jnp.bfloat16).at[:, :H].set(w1.astype(jnp.bfloat16))
    b1p = jnp.zeros((1, Hp), jnp.float32).at[:, :H].set(b1)
    w2p = jnp.zeros((Hp, Cp), jnp.bfloat16).at[:H, :C].set(w2.astype(jnp.bfloat16))
    b2p = jnp.full((1, Cp), NEG_INF, jnp.float32).at[:, :C].set(b2)
    return w1p, b1p, w2p, b2p


if __name__ == "__main__":
    # Sizes consistent with the module's config defaults:
    #   input_size = W2V_SIZE * 2 = 64, hidden (MLP.SIZE) = 32, classes = 8.
    B, D_IN, HIDDEN, CLASSES = 16, 64, 32, 8

    key = jax.random.PRNGKey(0)
    kx, k1, k2 = jax.random.split(key, 3)

    x = jax.random.normal(kx, (B, D_IN), jnp.float32)
    w1, b1 = init_linear_params(k1, D_IN, HIDDEN)
    w2, b2 = init_linear_params(k2, HIDDEN, CLASSES)
    w1p, b1p, w2p, b2p = pad_mlp_params(w1, b1, w2, b2)

    out = mlp_forward(x, w1p, b1p, w2p, b2p, num_classes=CLASSES)
    out = jax.block_until_ready(out)

    # Pure-JAX reference mirroring the kernel's bf16-matmul / f32-epilogue path.
    xb = x.astype(jnp.bfloat16)
    h_ref = jnp.maximum(
        jnp.dot(xb, w1.astype(jnp.bfloat16),
                preferred_element_type=jnp.float32) + b1, 0.0)
    logits_ref = jnp.dot(h_ref.astype(jnp.bfloat16), w2.astype(jnp.bfloat16),
                         preferred_element_type=jnp.float32) + b2
    ref = jax.nn.softmax(logits_ref, axis=-1)

    out_f32 = out.astype(jnp.float32)
    assert out.shape == (B, CLASSES)
    assert out.dtype == jnp.bfloat16
    max_err = float(jnp.max(jnp.abs(out_f32 - ref)))
    # bf16 output cast bounds the per-element error at ~2^-9 of the value.
    assert jnp.allclose(out_f32, ref, atol=6e-3, rtol=0.0), max_err
    # Exact in-kernel normalization; only bf16 output rounding remains.
    assert jnp.allclose(jnp.sum(out_f32, axis=-1), 1.0, atol=1e-2)

    print("KERNEL_OK")
</pallas_src>

<mosaic_0001>
module attributes {stable_mosaic.version = 11 : i64} {
  func.func @mlp_kernel(%arg0: i32, %arg1: memref<16x64xf32, #tpu.memory_space<vmem>>, %arg2: memref<64x128xbf16, #tpu.memory_space<vmem>>, %arg3: memref<1x128xf32, #tpu.memory_space<vmem>>, %arg4: memref<128x128xbf16, #tpu.memory_space<vmem>>, %arg5: memref<1x128xf32, #tpu.memory_space<vmem>>, %arg6: memref<16x128xbf16, #tpu.memory_space<vmem>>) attributes {dimension_semantics = [#tpu.dimension_semantics<parallel>], iteration_bounds = array<i64: 1>, scalar_prefetch = 0 : i64, scratch_operands = 0 : i64, tpu.core_type = #tpu.core_type<tc>, window_params = [{transform_indices = @transform_0, window_bounds = array<i64: 16, 64>}, {pipeline_mode = #tpu.pipeline_mode<synchronous>, transform_indices = @transform_1, window_bounds = array<i64: 64, 128>}, {pipeline_mode = #tpu.pipeline_mode<synchronous>, transform_indices = @transform_2, window_bounds = array<i64: 1, 128>}, {pipeline_mode = #tpu.pipeline_mode<synchronous>, transform_indices = @transform_3, window_bounds = array<i64: 128, 128>}, {pipeline_mode = #tpu.pipeline_mode<synchronous>, transform_indices = @transform_4, window_bounds = array<i64: 1, 128>}, {transform_indices = @transform_5, window_bounds = array<i64: 16, 128>}]} {
    %c0 = arith.constant 0 : index
    %c0_0 = arith.constant 0 : index
    %0 = vector.load %arg1[%c0, %c0_0] : memref<16x64xf32, #tpu.memory_space<vmem>>, vector<16x64xf32>
    %1 = arith.truncf %0 : vector<16x64xf32> to vector<16x64xbf16>
    %c0_1 = arith.constant 0 : index
    %c0_2 = arith.constant 0 : index
    %2 = vector.load %arg2[%c0_1, %c0_2] : memref<64x128xbf16, #tpu.memory_space<vmem>>, vector<64x128xbf16>
    %cst = arith.constant dense<0.000000e+00> : vector<16x128xf32>
    %3 = tpu.matmul %1, %2, %cst {dimension_numbers = #tpu.dot_dimension_numbers<[1], [0], [0], [1], [0, 0, 1, 1], [], []>} : vector<16x64xbf16>, vector<64x128xbf16>, vector<16x128xf32> -> vector<16x128xf32>
    %c0_3 = arith.constant 0 : index
    %c0_4 = arith.constant 0 : index
    %4 = vector.load %arg3[%c0_3, %c0_4] : memref<1x128xf32, #tpu.memory_space<vmem>>, vector<1x128xf32>
    %5 = vector.broadcast %4 : vector<1x128xf32> to vector<16x128xf32>
    %6 = arith.addf %3, %5 : vector<16x128xf32>
    %cst_5 = arith.constant 0.000000e+00 : f32
    %7 = vector.broadcast %cst_5 : f32 to vector<16x128xf32>
    %8 = arith.maximumf %6, %7 : vector<16x128xf32>
    %9 = arith.truncf %8 : vector<16x128xf32> to vector<16x128xbf16>
    %c0_6 = arith.constant 0 : index
    %c0_7 = arith.constant 0 : index
    %10 = vector.load %arg4[%c0_6, %c0_7] : memref<128x128xbf16, #tpu.memory_space<vmem>>, vector<128x128xbf16>
    %cst_8 = arith.constant dense<0.000000e+00> : vector<16x128xf32>
    %11 = tpu.matmul %9, %10, %cst_8 {dimension_numbers = #tpu.dot_dimension_numbers<[1], [0], [0], [1], [0, 0, 1, 1], [], []>} : vector<16x128xbf16>, vector<128x128xbf16>, vector<16x128xf32> -> vector<16x128xf32>
    %c0_9 = arith.constant 0 : index
    %c0_10 = arith.constant 0 : index
    %12 = vector.load %arg5[%c0_9, %c0_10] : memref<1x128xf32, #tpu.memory_space<vmem>>, vector<1x128xf32>
    %13 = vector.broadcast %12 : vector<1x128xf32> to vector<16x128xf32>
    %14 = arith.addf %11, %13 : vector<16x128xf32>
    %cst_11 = arith.constant dense<0xFF800000> : vector<16xf32>
    %15 = vector.multi_reduction <maximumf>, %14, %cst_11 [1] : vector<16x128xf32> to vector<16xf32>
    %16 = vector.shape_cast %15 : vector<16xf32> to vector<16x1xf32>
    %17 = vector.broadcast %16 : vector<16x1xf32> to vector<16x128xf32>
    %18 = arith.subf %14, %17 : vector<16x128xf32>
    %19 = math.exp %18 : vector<16x128xf32>
    %cst_12 = arith.constant dense<0.000000e+00> : vector<16xf32>
    %20 = vector.multi_reduction <add>, %19, %cst_12 [1] : vector<16x128xf32> to vector<16xf32>
    %21 = vector.shape_cast %20 : vector<16xf32> to vector<16x1xf32>
    %22 = vector.broadcast %21 : vector<16x1xf32> to vector<16x128xf32>
    %23 = arith.divf %19, %22 : vector<16x128xf32>
    %24 = arith.truncf %23 : vector<16x128xf32> to vector<16x128xbf16>
    %c0_13 = arith.constant 0 : index
    %c0_14 = arith.constant 0 : index
    %25 = vector.load %arg6[%c0_13, %c0_14] : memref<16x128xbf16, #tpu.memory_space<vmem>>, vector<16x128xbf16>
    tpu.vector_store %arg6[%c0_13, %c0_14], %24 {strides = array<i32>} : memref<16x128xbf16, #tpu.memory_space<vmem>>, vector<16x128xbf16>,
    return
  }
  func.func @transform_0(%arg0: i32) -> (i32, i32) {
    %c0_i32 = arith.constant 0 : i32
    %c0_i32_0 = arith.constant 0 : i32
    return %arg0, %c0_i32 : i32, i32
  }
  func.func @transform_1(%arg0: i32) -> (i32, i32) {
    %c0_i32 = arith.constant 0 : i32
    %c0_i32_0 = arith.constant 0 : i32
    %c0_i32_1 = arith.constant 0 : i32
    return %c0_i32, %c0_i32_0 : i32, i32
  }
  func.func @transform_2(%arg0: i32) -> (i32, i32) {
    %c0_i32 = arith.constant 0 : i32
    %c0_i32_0 = arith.constant 0 : i32
    %c0_i32_1 = arith.constant 0 : i32
    return %c0_i32, %c0_i32_0 : i32, i32
  }
  func.func @transform_3(%arg0: i32) -> (i32, i32) {
    %c0_i32 = arith.constant 0 : i32
    %c0_i32_0 = arith.constant 0 : i32
    %c0_i32_1 = arith.constant 0 : i32
    return %c0_i32, %c0_i32_0 : i32, i32
  }
  func.func @transform_4(%arg0: i32) -> (i32, i32) {
    %c0_i32 = arith.constant 0 : i32
    %c0_i32_0 = arith.constant 0 : i32
    %c0_i32_1 = arith.constant 0 : i32
    return %c0_i32, %c0_i32_0 : i32, i32
  }
  func.func @transform_5(%arg0: i32) -> (i32, i32) {
    %c0_i32 = arith.constant 0 : i32
    %c0_i32_0 = arith.constant 0 : i32
    return %arg0, %c0_i32 : i32, i32
  }
}

</mosaic_0001>

<llo_original>
// kernel: tpu_custom_call.1
$region0: #{tpu_custom_call.1}
  #allocation0 [shape = 'u32[]', space=smem, size = 0x4, offset = 0x4, fixed_abs, tag = 'smem constant byte address 0x4 - core index']
  #allocation1 [shape = 'u32[144,128]{1,0:T(1,128)}', space=vmem, size = 0x12000, scoped, tag = 'internal scratch']
  %s0 = inlined_call_operand.hbm [shape: f32[16,64], index: 0, kind: input, shape index: {}]
  %s1 = inlined_call_operand.hbm [shape: bf16[64,128], index: 1, kind: input, shape index: {}]
  %s2 = inlined_call_operand.vmem [shape: f32[1,128], index: 2, kind: input, shape index: {}]
  %s3 = inlined_call_operand.hbm [shape: bf16[128,128], index: 3, kind: input, shape index: {}]
  %s4 = inlined_call_operand.vmem [shape: f32[1,128], index: 4, kind: input, shape index: {}]
  %s5 = inlined_call_operand.hbm [shape: bf16[16,128], index: 5, kind: output, shape index: {}]
  %s6 = sld [smem:[#allocation0]]
  $region42: #{tpu_custom_call.1} parent=0
    _
  %s8 = ssub.s32 1, %s6
  %s9 = scalar_select 0, %s8, %s6
  $region1: #{tpu_custom_call.1} parent=0
    #allocation2 [shape = 'u8[8192]{0}', space=vmem, size = 0x2000, scoped, tag = 'input window, operand 0, single buffered']
    #allocation3 [shape = 's32[1]{0}', space=sflag, size = 0x4, scoped, tag = 'scoped memory for tpu_custom_call.1']
    #allocation4 [shape = 's32[1]{0}', space=sflag, size = 0x4, scoped, tag = 'scoped memory for tpu_custom_call.1']
    #allocation5 [shape = 'u8[16384]{0}', space=vmem, size = 0x4000, scoped, tag = 'input window, operand 1, single buffered']
    #allocation6 [shape = 's32[1]{0}', space=sflag, size = 0x4, scoped, tag = 'scoped memory for tpu_custom_call.1']
    #allocation7 [shape = 'u8[32768]{0}', space=vmem, size = 0x8000, scoped, tag = 'input window, operand 3, single buffered']
    #allocation8 [shape = 'u8[4096]{0}', space=vmem, size = 0x1000, scoped, tag = 'output window, operand 0, single buffered']
    %10 = vsyncpa [#allocation3], 0
    %11 = vsyncpa [#allocation6], 0
    %12 = vsyncpa [#allocation4], 0
    // Predicated region
    $region2: #{tpu_custom_call.1} parent=1 // pred_check
      _
    $region3: #{tpu_custom_call.1} parent=1 // pred_check_branch
      %14 = sbr.rel (0) target = $region5
    $region4: #{tpu_custom_call.1} parent=1 // pred_region
      %s16 = ssub.s32 256, 256
      %17 = vsyncadd [#allocation3], %s16
      %s18 = sshll.u32 [#allocation2], 4
      %s19 = int_to_ptr.vmem [resolvable:$true] %s18
      %24 = dma.hbm_to_vmem [thread:$0]  %s0, 256, %s19, [#allocation3], 128, 128, 8
    $region5: #{tpu_custom_call.1} parent=1 // pred_fallthru
      _
    // Predicated region
    $region6: #{tpu_custom_call.1} parent=1 // pred_check
      _
    $region7: #{tpu_custom_call.1} parent=1 // pred_check_branch
      %26 = sbr.rel (0) target = $region9
    $region8: #{tpu_custom_call.1} parent=1 // pred_region
      %s28 = ssub.s32 512, 512
      %29 = vsyncadd [#allocation6], %s28
      %s30 = sshll.u32 [#allocation5], 4
      %s31 = int_to_ptr.vmem [resolvable:$true] %s30
      %36 = dma.hbm_to_vmem [thread:$0]  %s1, 512, %s31, [#allocation6], 64, 64, 4
    $region9: #{tpu_custom_call.1} parent=1 // pred_fallthru
      _
    // Predicated region
    $region10: #{tpu_custom_call.1} parent=1 // pred_check
      _
    $region11: #{tpu_custom_call.1} parent=1 // pred_check_branch
      %38 = sbr.rel (0) target = $region13
    $region12: #{tpu_custom_call.1} parent=1 // pred_region
      _
    $region13: #{tpu_custom_call.1} parent=1 // pred_fallthru
      _
    // Predicated region
    $region14: #{tpu_custom_call.1} parent=1 // pred_check
      _
    $region15: #{tpu_custom_call.1} parent=1 // pred_check_branch
      %40 = sbr.rel (0) target = $region17
    $region16: #{tpu_custom_call.1} parent=1 // pred_region
      %s42 = ssub.s32 1024, 1024
      %43 = vsyncadd [#allocation6], %s42
      %s44 = sshll.u32 [#allocation7], 4
      %s45 = int_to_ptr.vmem [resolvable:$true] %s44
      %50 = dma.hbm_to_vmem [thread:$0]  %s3, 1024, %s45, [#allocation6], 64, 64, 4
    $region17: #{tpu_custom_call.1} parent=1 // pred_fallthru
      _
    // Predicated region
    $region18: #{tpu_custom_call.1} parent=1 // pred_check
      _
    $region19: #{tpu_custom_call.1} parent=1 // pred_check_branch
      %52 = sbr.rel (0) target = $region21
    $region20: #{tpu_custom_call.1} parent=1 // pred_region
      _
    $region21: #{tpu_custom_call.1} parent=1 // pred_fallthru
      _
    // Predicated region
    $region22: #{tpu_custom_call.1} parent=1 // pred_check
      _
    $region23: #{tpu_custom_call.1} parent=1 // pred_check_branch
      %54 = sbr.rel (0) target = $region25
    $region24: #{tpu_custom_call.1} parent=1 // pred_region
      %55 = dma.done [#allocation3], 256
    $region25: #{tpu_custom_call.1} parent=1 // pred_fallthru
      _
    // Predicated region
    $region26: #{tpu_custom_call.1} parent=1 // pred_check
      _
    $region27: #{tpu_custom_call.1} parent=1 // pred_check_branch
      %57 = sbr.rel (0) target = $region29
    $region28: #{tpu_custom_call.1} parent=1 // pred_region
      %58 = dma.done [#allocation6], 512
    $region29: #{tpu_custom_call.1} parent=1 // pred_fallthru
      _
    // Predicated region
    $region30: #{tpu_custom_call.1} parent=1 // pred_check
      _
    $region31: #{tpu_custom_call.1} parent=1 // pred_check_branch
      %60 = sbr.rel (0) target = $region33
    $region32: #{tpu_custom_call.1} parent=1 // pred_region
      %61 = dma.done [#allocation6], 1024
    $region33: #{tpu_custom_call.1} parent=1 // pred_fallthru
      _
    %v63 = vld [vmem:[#allocation2] sm:$0xff]
    %v64 = vld [vmem:[#allocation2 + $0x8] sm:$0xff]
    %v65 = vpack.c.bf16 %v64, %v63
    %v66 = vld [vmem:[#allocation5] sm:$0xf]
    %v67 = vld [vmem:[#allocation5 + $0x4] sm:$0xf]
    %v68 = vld [vmem:[#allocation5 + $0x8] sm:$0xf]
    %v69 = vld [vmem:[#allocation5 + $0xc] sm:$0xf]
    %v70 = vld [vmem:[#allocation5 + $0x10] sm:$0xf]
    %v71 = vld [vmem:[#allocation5 + $0x14] sm:$0xf]
    %v72 = vld [vmem:[#allocation5 + $0x18] sm:$0xf]
    %v73 = vld [vmem:[#allocation5 + $0x1c] sm:$0xf]
    %v74 = vld [vmem:[%s2] sm:$0x1]
    %v76 = vlaneseq
    %v77 = vshrl.u32 %v76, 7
    %v78 = vsub.s32 0, %v77
    %v79 = vrot.slane %v74, %v78
    %v89 = vunpack.c.l.b16 %v66
    %v90 = vunpack.c.l.b16 %v67
    %v91 = vunpack.c.l.b16 %v68
    %v92 = vunpack.c.l.b16 %v69
    %v93 = vunpack.c.l.b16 %v70
    %v94 = vunpack.c.l.b16 %v71
    %v95 = vunpack.c.l.b16 %v72
    %v96 = vunpack.c.l.b16 %v73
    %v97 = vpack.c.b16 %v90, %v89
    %v98 = vpack.c.b16 %v92, %v91
    %v99 = vpack.c.b16 %v94, %v93
    %v100 = vpack.c.b16 %v96, %v95
    %vm105 = vcmask 523264
    %v107 = vsel %vm105, %v65, 0
    %109 = vmatprep.subr.bf16.mxu0 0
    %110 = vmatpush1.bf16.msra.mxu0 %v97
    %111 = vmatprep.subr.bf16.mxu0 0
    %112 = vmatpush1.bf16.msra.mxu0 %v98
    %113 = vmatprep.subr.bf16.mxu0 0
    %114 = vmatpush1.bf16.msra.mxu0 %v99
    %115 = vmatprep.subr.bf16.mxu0 0
    %116 = vmatpush1.bf16.msra.mxu0 %v100
    %117 = vmatprep.subr.bf16.mxu0 0
    %118 = vmatpush1.bf16.msra.mxu0 0
    %119 = vmatprep.subr.bf16.mxu0 0
    %120 = vmatpush1.bf16.msra.mxu0 0
    %121 = vmatprep.subr.bf16.mxu0 0
    %122 = vmatpush1.bf16.msra.mxu0 0
    %123 = vmatprep.subr.bf16.mxu0 0
    %124 = vmatpush1.bf16.msra.mxu0 0
    %125 = vmatprep.subr.bf16.mxu0 0
    %126 = vmatpush1.bf16.msra.mxu0 0
    %127 = vmatprep.subr.bf16.mxu0 0
    %128 = vmatpush1.bf16.msra.mxu0 0
    %129 = vmatprep.subr.bf16.mxu0 0
    %130 = vmatpush1.bf16.msra.mxu0 0
    %131 = vmatprep.subr.bf16.mxu0 0
    %132 = vmatpush1.bf16.msra.mxu0 0
    %133 = vmatprep.subr.bf16.mxu0 0
    %134 = vmatpush1.bf16.msra.mxu0 0
    %135 = vmatprep.subr.bf16.mxu0 0
    %136 = vmatpush1.bf16.msra.mxu0 0
    %137 = vmatprep.subr.bf16.mxu0 0
    %138 = vmatpush1.bf16.msra.mxu0 0
    %139 = vmatprep.subr.bf16.mxu0 0
    %140 = vmatpush1.bf16.msra.mxu0 0
    %141 = vmatprep.mubr.bf16.mxu0 0
    %142 = vmatmul.mubr.bf16.gmra.mrb[0].mxu0 %v107
    %v143 = vpop.f32.mrb[0].mxu0
    %v144 = vadd.f32 %v79, %v143
    %v145 = vpop.f32.mrb[0].mxu0
    %v146 = vpop.f32.mrb[0].mxu0
    %v147 = vadd.f32 %v79, %v146
    %v148 = vpop.f32.mrb[0].mxu0
    %149 = vdwg.mxu0
    %v150 = vmax.f32 %v144, 0.0
    %v151 = vmax.f32 %v147, 0.0
    %v152 = vpack.c.bf16 %v151, %v150
    %v153 = vld [vmem:[#allocation7] sm:$0xf]
    %v154 = vld [vmem:[#allocation7 + $0x4] sm:$0xf]
    %v155 = vld [vmem:[#allocation7 + $0x8] sm:$0xf]
    %v156 = vld [vmem:[#allocation7 + $0xc] sm:$0xf]
    %v157 = vld [vmem:[#allocation7 + $0x10] sm:$0xf]
    %v158 = vld [vmem:[#allocation7 + $0x14] sm:$0xf]
    %v159 = vld [vmem:[#allocation7 + $0x18] sm:$0xf]
    %v160 = vld [vmem:[#allocation7 + $0x1c] sm:$0xf]
    %v161 = vld [vmem:[#allocation7 + $0x20] sm:$0xf]
    %v162 = vld [vmem:[#allocation7 + $0x24] sm:$0xf]
    %v163 = vld [vmem:[#allocation7 + $0x28] sm:$0xf]
    %v164 = vld [vmem:[#allocation7 + $0x2c] sm:$0xf]
    %v165 = vld [vmem:[#allocation7 + $0x30] sm:$0xf]
    %v166 = vld [vmem:[#allocation7 + $0x34] sm:$0xf]
    %v167 = vld [vmem:[#allocation7 + $0x38] sm:$0xf]
    %v168 = vld [vmem:[#allocation7 + $0x3c] sm:$0xf]
    %v169 = vld [vmem:[%s4] sm:$0x1]
    %v171 = vlaneseq
    %v172 = vshrl.u32 %v171, 7
    %v173 = vsub.s32 0, %v172
    %v174 = vrot.slane %v169, %v173
    %v192 = vunpack.c.l.b16 %v153
    %v193 = vunpack.c.l.b16 %v154
    %v194 = vunpack.c.l.b16 %v155
    %v195 = vunpack.c.l.b16 %v156
    %v196 = vunpack.c.l.b16 %v157
    %v197 = vunpack.c.l.b16 %v158
    %v198 = vunpack.c.l.b16 %v159
    %v199 = vunpack.c.l.b16 %v160
    %v200 = vunpack.c.l.b16 %v161
    %v201 = vunpack.c.l.b16 %v162
    %v202 = vunpack.c.l.b16 %v163
    %v203 = vunpack.c.l.b16 %v164
    %v204 = vunpack.c.l.b16 %v165
    %v205 = vunpack.c.l.b16 %v166
    %v206 = vunpack.c.l.b16 %v167
    %v207 = vunpack.c.l.b16 %v168
    %v208 = vpack.c.b16 %v193, %v192
    %v209 = vpack.c.b16 %v195, %v194
    %v210 = vpack.c.b16 %v197, %v196
    %v211 = vpack.c.b16 %v199, %v198
    %v212 = vpack.c.b16 %v201, %v200
    %v213 = vpack.c.b16 %v203, %v202
    %v214 = vpack.c.b16 %v205, %v204
    %v215 = vpack.c.b16 %v207, %v206
    %224 = vmatprep.subr.bf16.mxu0 0
    %225 = vmatpush1.bf16.msra.mxu0 %v208
    %226 = vmatprep.subr.bf16.mxu0 0
    %227 = vmatpush1.bf16.msra.mxu0 %v209
    %228 = vmatprep.subr.bf16.mxu0 0
    %229 = vmatpush1.bf16.msra.mxu0 %v210
    %230 = vmatprep.subr.bf16.mxu0 0
    %231 = vmatpush1.bf16.msra.mxu0 %v211
    %232 = vmatprep.subr.bf16.mxu0 0
    %233 = vmatpush1.bf16.msra.mxu0 %v212
    %234 = vmatprep.subr.bf16.mxu0 0
    %235 = vmatpush1.bf16.msra.mxu0 %v213
    %236 = vmatprep.subr.bf16.mxu0 0
    %237 = vmatpush1.bf16.msra.mxu0 %v214
    %238 = vmatprep.subr.bf16.mxu0 0
    %239 = vmatpush1.bf16.msra.mxu0 %v215
    %240 = vmatprep.subr.bf16.mxu0 0
    %241 = vmatpush1.bf16.msra.mxu0 0
    %242 = vmatprep.subr.bf16.mxu0 0
    %243 = vmatpush1.bf16.msra.mxu0 0
    %244 = vmatprep.subr.bf16.mxu0 0
    %245 = vmatpush1.bf16.msra.mxu0 0
    %246 = vmatprep.subr.bf16.mxu0 0
    %247 = vmatpush1.bf16.msra.mxu0 0
    %248 = vmatprep.subr.bf16.mxu0 0
    %249 = vmatpush1.bf16.msra.mxu0 0
    %250 = vmatprep.subr.bf16.mxu0 0
    %251 = vmatpush1.bf16.msra.mxu0 0
    %252 = vmatprep.subr.bf16.mxu0 0
    %253 = vmatpush1.bf16.msra.mxu0 0
    %254 = vmatprep.subr.bf16.mxu0 0
    %255 = vmatpush1.bf16.msra.mxu0 0
    %256 = vmatprep.mubr.bf16.mxu0 0
    %257 = vmatmul.mubr.bf16.gmra.mrb[0].mxu0 %v152
    %v258 = vpop.f32.mrb[0].mxu0
    %v259 = vadd.f32 %v174, %v258
    %v260 = vpop.f32.mrb[0].mxu0
    %v261 = vpop.f32.mrb[0].mxu0
    %v262 = vadd.f32 %v174, %v261
    %v263 = vpop.f32.mrb[0].mxu0
    %264 = vdwg.mxu0
    %265 = vmax.xlane.f32.xlu0 %v259
    %v266 = vpop.xlane.xlu0 %265
    %267 = vmax.xlane.f32.xlu0 %v262
    %v268 = vpop.xlane.xlu0 %267
    %v269 = vsub.f32 %v259, %v266
    %v270 = vsub.f32 %v262, %v268
    %v271 = vmul.f32 %v269, 1.442695
    %v272 = vpow.pop %v271
    %v273 = vmul.f32 %v270, 1.442695
    %v274 = vpow.pop %v273
    %275 = vadd.xlane.f32.xlu0 %v272
    %v276 = vpop.xlane.xlu0 %275
    %277 = vadd.xlane.f32.xlu0 %v274
    %v278 = vpop.xlane.xlu0 %277
    %v279 = vrcp.pop %v276
    %v280 = vmul.f32 %v272, %v279
    %v281 = vrcp.pop %v278
    %v282 = vmul.f32 %v274, %v281
    %v283 = vpack.c.bf16 %v282, %v280
    %v285 = vunpack.c.l.b16 %v283
    %v286 = vunpack.c.h.b16 %v283
    %v287 = vpack.c.b16 %v285, %v285
    %v288 = vpack.c.b16 %v286, %v286
    %291 = vst [vmem:[#allocation8] sm:$0xf] %v287
    %292 = vst [vmem:[#allocation8 + $0x4] sm:$0xf] %v288
    // Predicated region
    $region34: #{tpu_custom_call.1} parent=1 // pred_check
      _
    $region35: #{tpu_custom_call.1} parent=1 // pred_check_branch
      %294 = sbr.rel (0) target = $region37
    $region36: #{tpu_custom_call.1} parent=1 // pred_region
      %s296 = ssub.s32 128, 128
      %297 = vsyncadd [#allocation4], %s296
      %s298 = sshll.u32 [#allocation8], 4
      %s299 = int_to_ptr.vmem [resolvable:$true] %s298
      %304 = dma.vmem_to_hbm [thread:$0]  %s299, 128, %s5, [#allocation4], 64, 64, 4
    $region37: #{tpu_custom_call.1} parent=1 // pred_fallthru
      _
    // Predicated region
    $region38: #{tpu_custom_call.1} parent=1 // pred_check
      _
    $region39: #{tpu_custom_call.1} parent=1 // pred_check_branch
      %306 = sbr.rel (0) target = $region41
    $region40: #{tpu_custom_call.1} parent=1 // pred_region
      %307 = dma.done [#allocation4], 128
    $region41: #{tpu_custom_call.1} parent=1 // pred_fallthru
      _
    %308 = vsyncpa [#allocation3], 1
    %309 = vsyncpa [#allocation6], 1
    %310 = vsyncpa [#allocation4], 1

</llo_original>
